<compile_context>
chip_gen: v7x
topology: tpu7x:2x2x1
jax: 0.10.0
libtpu: 0.0.40
codegen_flags: <defaults>
</compile_context>

<pallas_src>
import functools
import math

import jax
import jax.numpy as jnp
from jax.experimental import pallas as pl
from jax.experimental.pallas import tpu as pltpu


def _round_up(v, m):
    return ((v + m - 1) // m) * m


def _vmem_capacity_bytes():
    """Per-core VMEM capacity; conservative (v7x = 64 MiB) fallback if unknown."""
    try:
        return int(pltpu.get_tpu_info().vmem_capacity_bytes)
    except Exception:
        return 64 << 20


def _tile_plan(in_features, out_features):
    """Generation-aware tile plan. Returns (tk, tn, Kp, Np, tm_cap, vmem_limit)."""
    if _vmem_capacity_bytes() >= (96 << 20):
        # v5e / v6e: 128 MiB physical VMEM -> bigger K tiles, raised scoped limit.
        tm_cap, tn_d, tk_d = 512, 512, 2048        # ~18 MiB double-buffered (f32)
        vmem_limit = 64 << 20
    else:
        # v7x: 64 MiB physical / 32 MiB default scoped -> keep footprint ~10 MiB.
        tm_cap, tn_d, tk_d = 512, 512, 1024
        vmem_limit = None
    tk = min(tk_d, _round_up(in_features, 128))
    tn = min(tn_d, _round_up(out_features, 128))
    Kp = _round_up(in_features, tk)
    Np = _round_up(out_features, tn)
    return tk, tn, Kp, Np, tm_cap, vmem_limit


# ----------------------------- kernels --------------------------------------


def _linear_small_kernel(x_ref, wt_ref, b_ref, o_ref):
    # Whole (padded) weight & bias resident in VMEM; one MXU matmul per M tile.
    o_ref[...] = (
        jnp.dot(x_ref[...], wt_ref[...], preferred_element_type=jnp.float32)
        + b_ref[...].astype(jnp.float32)
    ).astype(o_ref.dtype)


def _linear_kernel_f32out(x_ref, wt_ref, b_ref, o_ref):
    # f32 output: accumulate directly into the resident output tile (no scratch,
    # no final copy/convert pass).
    k = pl.program_id(2)

    @pl.when(k == 0)
    def _():
        o_ref[...] = jnp.zeros_like(o_ref)

    o_ref[...] += jnp.dot(
        x_ref[...], wt_ref[...], preferred_element_type=jnp.float32
    )

    @pl.when(k == pl.num_programs(2) - 1)
    def _():
        o_ref[...] += b_ref[...].astype(jnp.float32)


def _linear_kernel_acc(x_ref, wt_ref, b_ref, o_ref, acc_ref):
    # Low-precision output: f32 VMEM accumulator, bias add + cast on last K step.
    k = pl.program_id(2)

    @pl.when(k == 0)
    def _():
        acc_ref[...] = jnp.zeros_like(acc_ref)

    acc_ref[...] += jnp.dot(
        x_ref[...], wt_ref[...], preferred_element_type=jnp.float32
    )

    @pl.when(k == pl.num_programs(2) - 1)
    def _():
        o_ref[...] = (acc_ref[...] + b_ref[...].astype(jnp.float32)).astype(
            o_ref.dtype
        )


# ----------------------------- forward --------------------------------------


@functools.partial(
    jax.jit, static_argnames=("out_dim", "tk", "tn", "tm_cap", "vmem_limit")
)
def _linear_forward_padded(x, wt_p, b_p, *, out_dim, tk, tn, tm_cap, vmem_limit):
    """y = x @ W.T + b, with pad(W.T) (Kp, Np) and padded bias precomputed."""
    *lead, D = x.shape
    Kp, Np = wt_p.shape
    N = out_dim
    M = int(math.prod(lead)) if lead else 1

    x2 = x.reshape(M, D)
    tm = min(tm_cap, _round_up(M, 8))
    Mp = _round_up(M, tm)
    x_p = x2 if (Mp == M and Kp == D) else jnp.pad(x2, ((0, Mp - M), (0, Kp - D)))

    itemsize = jnp.dtype(x.dtype).itemsize
    cost = pl.CostEstimate(
        flops=2 * M * N * D,
        transcendentals=0,
        bytes_accessed=(M * D + D * N + M * N) * itemsize,
    )

    # Small-layer fast path: whole weight/bias resident in VMEM, 1-D grid,
    # no reduction axis, no accumulator phases.
    small = 2 * (Kp * Np + Np + tm * (Kp + Np)) * 4 <= (8 << 20)

    if small:
        y_p = pl.pallas_call(
            _linear_small_kernel,
            out_shape=jax.ShapeDtypeStruct((Mp, Np), x.dtype),
            grid_spec=pltpu.PrefetchScalarGridSpec(
                num_scalar_prefetch=0,
                grid=(Mp // tm,),
                in_specs=[
                    pl.BlockSpec((tm, Kp), lambda i: (i, 0)),    # x tile
                    pl.BlockSpec((Kp, Np), lambda i: (0, 0)),    # full W.T
                    pl.BlockSpec((1, Np), lambda i: (0, 0)),     # full bias
                ],
                out_specs=pl.BlockSpec((tm, Np), lambda i: (i, 0)),
            ),
            compiler_params=pltpu.CompilerParams(
                dimension_semantics=("parallel",),
            ),
            cost_estimate=cost,
        )(x_p, wt_p, b_p)
    else:
        grid = (Mp // tm, Np // tn, Kp // tk)
        f32_out = jnp.dtype(x.dtype) == jnp.float32
        kernel = _linear_kernel_f32out if f32_out else _linear_kernel_acc
        scratch = [] if f32_out else [pltpu.VMEM((tm, tn), jnp.float32)]
        cp_kwargs = dict(
            dimension_semantics=("parallel", "parallel", "arbitrary")
        )
        if vmem_limit is not None:
            cp_kwargs["vmem_limit_bytes"] = vmem_limit

        y_p = pl.pallas_call(
            kernel,
            out_shape=jax.ShapeDtypeStruct((Mp, Np), x.dtype),
            grid_spec=pltpu.PrefetchScalarGridSpec(
                num_scalar_prefetch=0,
                grid=grid,
                in_specs=[
                    pl.BlockSpec((tm, tk), lambda i, j, k: (i, k)),   # x tile
                    pl.BlockSpec((tk, tn), lambda i, j, k: (k, j)),   # W.T tile
                    pl.BlockSpec((1, tn), lambda i, j, k: (0, j)),    # bias tile
                ],
                out_specs=pl.BlockSpec((tm, tn), lambda i, j, k: (i, j)),
                scratch_shapes=scratch,
            ),
            compiler_params=pltpu.CompilerParams(**cp_kwargs),
            cost_estimate=cost,
        )(x_p, wt_p, b_p)

    y = y_p[:M, :N]
    return y.reshape(*lead, N)


# ----------------------------- module wrapper --------------------------------


class MyLinear:
    """JAX/Pallas port of the lazy PyTorch `MyLinear` module.

    Parameters are created on the first call from x.shape[-1], mirroring the
    lazy nn.Linear construction.  pad(weight.T) and the padded bias are cached
    at creation time so the per-forward path is just the jitted pad + matmul.
    """

    def __init__(self, output_dim, key):
        self.output_dim = output_dim
        self._key = key
        self.weight = None        # (output_dim, in_features), like nn.Linear.weight
        self.bias = None          # (output_dim,)
        self._wt_padded = None    # cached pad(weight.T), shape (Kp, Np)
        self._b_padded = None     # cached padded bias, shape (1, Np)
        self._plan = None         # (tk, tn, tm_cap, vmem_limit)

    def __call__(self, x):
        if self.weight is None:
            in_features = x.shape[-1]
            kw, kb = jax.random.split(self._key)
            bound = 1.0 / math.sqrt(in_features)  # nn.Linear default init range
            self.weight = jax.random.uniform(
                kw, (self.output_dim, in_features), dtype=x.dtype,
                minval=-bound, maxval=bound)
            self.bias = jax.random.uniform(
                kb, (self.output_dim,), dtype=x.dtype,
                minval=-bound, maxval=bound)

            tk, tn, Kp, Np, tm_cap, vmem_limit = _tile_plan(
                in_features, self.output_dim)
            self._plan = (tk, tn, tm_cap, vmem_limit)
            self._wt_padded = jnp.pad(
                self.weight.T,
                ((0, Kp - in_features), (0, Np - self.output_dim)))
            self._b_padded = jnp.pad(
                self.bias, (0, Np - self.output_dim)).reshape(1, Np)

        tk, tn, tm_cap, vmem_limit = self._plan
        return _linear_forward_padded(
            x, self._wt_padded, self._b_padded,
            out_dim=self.output_dim, tk=tk, tn=tn,
            tm_cap=tm_cap, vmem_limit=vmem_limit)


# TODO(synk): exact bit-for-bit replication of PyTorch's nn.Linear RNG stream is
#             not reproduced; parameter shapes and init ranges match nn.Linear.

if __name__ == "__main__":
    key = jax.random.PRNGKey(0)
    kx, kp, kx2, kp2 = jax.random.split(key, 4)

    # --- small shapes consistent with the module (fast, weight-resident path) ---
    B, S, D, OUT = 2, 8, 32, 64  # batch, seq, in_features, output_dim
    x = jax.random.normal(kx, (B, S, D), dtype=jnp.float32)
    layer = MyLinear(OUT, kp)
    y = jax.block_until_ready(layer(x))
    ref = jnp.matmul(
        x, layer.weight.T, precision=jax.lax.Precision.HIGHEST) + layer.bias
    assert y.shape == (B, S, OUT)
    assert jnp.allclose(y, ref, atol=1e-5, rtol=1e-5)

    # --- tiled K-accumulation path (multi-step reduction grid) ---
    M2, D2, OUT2 = 256, 4096, 1024
    x2 = jax.random.normal(kx2, (M2, D2), dtype=jnp.float32)
    layer2 = MyLinear(OUT2, kp2)
    y2 = jax.block_until_ready(layer2(x2))
    ref2 = jnp.matmul(
        x2, layer2.weight.T, precision=jax.lax.Precision.HIGHEST) + layer2.bias
    assert y2.shape == (M2, OUT2)
    assert jnp.allclose(y2, ref2, atol=1e-2, rtol=1e-2)

    print("KERNEL_OK")
</pallas_src>

<mosaic_0001>
module attributes {stable_mosaic.version = 11 : i64} {
  func.func @_linear_small_kernel(%arg0: i32, %arg1: memref<16x128xf32, #tpu.memory_space<vmem>>, %arg2: memref<128x128xf32, #tpu.memory_space<vmem>>, %arg3: memref<1x128xf32, #tpu.memory_space<vmem>>, %arg4: memref<16x128xf32, #tpu.memory_space<vmem>>) attributes {dimension_semantics = [#tpu.dimension_semantics<parallel>], iteration_bounds = array<i64: 1>, scalar_prefetch = 0 : i64, scratch_operands = 0 : i64, tpu.core_type = #tpu.core_type<tc>, window_params = [{transform_indices = @transform_0, window_bounds = array<i64: 16, 128>}, {pipeline_mode = #tpu.pipeline_mode<synchronous>, transform_indices = @transform_1, window_bounds = array<i64: 128, 128>}, {pipeline_mode = #tpu.pipeline_mode<synchronous>, transform_indices = @transform_2, window_bounds = array<i64: 1, 128>}, {transform_indices = @transform_3, window_bounds = array<i64: 16, 128>}]} {
    %c0 = arith.constant 0 : index
    %c0_0 = arith.constant 0 : index
    %0 = vector.load %arg1[%c0, %c0_0] : memref<16x128xf32, #tpu.memory_space<vmem>>, vector<16x128xf32>
    %c0_1 = arith.constant 0 : index
    %c0_2 = arith.constant 0 : index
    %1 = vector.load %arg2[%c0_1, %c0_2] : memref<128x128xf32, #tpu.memory_space<vmem>>, vector<128x128xf32>
    %cst = arith.constant dense<0.000000e+00> : vector<16x128xf32>
    %2 = tpu.matmul %0, %1, %cst {dimension_numbers = #tpu.dot_dimension_numbers<[1], [0], [0], [1], [0, 0, 1, 1], [], []>} : vector<16x128xf32>, vector<128x128xf32>, vector<16x128xf32> -> vector<16x128xf32>
    %c0_3 = arith.constant 0 : index
    %c0_4 = arith.constant 0 : index
    %3 = vector.load %arg3[%c0_3, %c0_4] : memref<1x128xf32, #tpu.memory_space<vmem>>, vector<1x128xf32>
    %4 = vector.broadcast %3 : vector<1x128xf32> to vector<16x128xf32>
    %5 = arith.addf %2, %4 : vector<16x128xf32>
    %c0_5 = arith.constant 0 : index
    %c0_6 = arith.constant 0 : index
    %6 = vector.load %arg4[%c0_5, %c0_6] : memref<16x128xf32, #tpu.memory_space<vmem>>, vector<16x128xf32>
    tpu.vector_store %arg4[%c0_5, %c0_6], %5 {strides = array<i32>} : memref<16x128xf32, #tpu.memory_space<vmem>>, vector<16x128xf32>,
    return
  }
  func.func @transform_0(%arg0: i32) -> (i32, i32) {
    %c0_i32 = arith.constant 0 : i32
    %c0_i32_0 = arith.constant 0 : i32
    return %arg0, %c0_i32 : i32, i32
  }
  func.func @transform_1(%arg0: i32) -> (i32, i32) {
    %c0_i32 = arith.constant 0 : i32
    %c0_i32_0 = arith.constant 0 : i32
    %c0_i32_1 = arith.constant 0 : i32
    return %c0_i32, %c0_i32_0 : i32, i32
  }
  func.func @transform_2(%arg0: i32) -> (i32, i32) {
    %c0_i32 = arith.constant 0 : i32
    %c0_i32_0 = arith.constant 0 : i32
    %c0_i32_1 = arith.constant 0 : i32
    return %c0_i32, %c0_i32_0 : i32, i32
  }
  func.func @transform_3(%arg0: i32) -> (i32, i32) {
    %c0_i32 = arith.constant 0 : i32
    %c0_i32_0 = arith.constant 0 : i32
    return %arg0, %c0_i32 : i32, i32
  }
}

</mosaic_0001>

<llo_original>
// kernel: _linear_forward_padded.1
$region0: #{_linear_forward_padded.1}
  #allocation0 [shape = 'u32[]', space=smem, size = 0x4, offset = 0x4, fixed_abs, tag = 'smem constant byte address 0x4 - core index']
  #allocation1 [shape = 'u32[144,128]{1,0:T(1,128)}', space=vmem, size = 0x12000, scoped, tag = 'internal scratch']
  %s0 = inlined_call_operand.vmem [shape: f32[16,128], index: 0, kind: input, shape index: {}]
  %s1 = inlined_call_operand.hbm [shape: f32[128,128], index: 1, kind: input, shape index: {}]
  %s2 = inlined_call_operand.vmem [shape: f32[1,128], index: 2, kind: input, shape index: {}]
  %s3 = inlined_call_operand.vmem [shape: f32[16,128], index: 3, kind: output, shape index: {}]
  %s4 = sld [smem:[#allocation0]]
  $region26: #{_linear_forward_padded.1} parent=0
    _
  %s6 = ssub.s32 1, %s4
  %s7 = scalar_select 0, %s6, %s4
  $region1: #{_linear_forward_padded.1} parent=0
    #allocation2 [shape = 'u8[65536]{0}', space=vmem, size = 0x10000, scoped, tag = 'input window, operand 1, single buffered']
    #allocation3 [shape = 's32[1]{0}', space=sflag, size = 0x4, scoped, tag = 'scoped memory for _linear_forward_padded.1']
    %8 = vsyncpa [#allocation3], 0
    // Predicated region
    $region2: #{_linear_forward_padded.1} parent=1 // pred_check
      _
    $region3: #{_linear_forward_padded.1} parent=1 // pred_check_branch
      %10 = sbr.rel (0) target = $region5
    $region4: #{_linear_forward_padded.1} parent=1 // pred_region
      _
    $region5: #{_linear_forward_padded.1} parent=1 // pred_fallthru
      _
    // Predicated region
    $region6: #{_linear_forward_padded.1} parent=1 // pred_check
      _
    $region7: #{_linear_forward_padded.1} parent=1 // pred_check_branch
      %12 = sbr.rel (0) target = $region9
    $region8: #{_linear_forward_padded.1} parent=1 // pred_region
      %s14 = ssub.s32 2048, 2048
      %15 = vsyncadd [#allocation3], %s14
      %s16 = sshll.u32 [#allocation2], 4
      %s17 = int_to_ptr.vmem [resolvable:$true] %s16
      %22 = dma.hbm_to_vmem [thread:$0]  %s1, 2048, %s17, [#allocation3], 128, 128, 8
    $region9: #{_linear_forward_padded.1} parent=1 // pred_fallthru
      _
    // Predicated region
    $region10: #{_linear_forward_padded.1} parent=1 // pred_check
      _
    $region11: #{_linear_forward_padded.1} parent=1 // pred_check_branch
      %24 = sbr.rel (0) target = $region13
    $region12: #{_linear_forward_padded.1} parent=1 // pred_region
      _
    $region13: #{_linear_forward_padded.1} parent=1 // pred_fallthru
      _
    // Predicated region
    $region14: #{_linear_forward_padded.1} parent=1 // pred_check
      _
    $region15: #{_linear_forward_padded.1} parent=1 // pred_check_branch
      %26 = sbr.rel (0) target = $region17
    $region16: #{_linear_forward_padded.1} parent=1 // pred_region
      %27 = dma.done [#allocation3], 2048
    $region17: #{_linear_forward_padded.1} parent=1 // pred_fallthru
      _
    %v28 = vld [vmem:[%s0] sm:$0xff]
    %v29 = vld [vmem:[%s0 + $0x8] sm:$0xff]
    %v30 = vld [vmem:[#allocation2] sm:$0xff]
    %v31 = vld [vmem:[#allocation2 + $0x8] sm:$0xff]
    %v32 = vld [vmem:[#allocation2 + $0x10] sm:$0xff]
    %v33 = vld [vmem:[#allocation2 + $0x18] sm:$0xff]
    %v34 = vld [vmem:[#allocation2 + $0x20] sm:$0xff]
    %v35 = vld [vmem:[#allocation2 + $0x28] sm:$0xff]
    %v36 = vld [vmem:[#allocation2 + $0x30] sm:$0xff]
    %v37 = vld [vmem:[#allocation2 + $0x38] sm:$0xff]
    %v38 = vld [vmem:[#allocation2 + $0x40] sm:$0xff]
    %v39 = vld [vmem:[#allocation2 + $0x48] sm:$0xff]
    %v40 = vld [vmem:[#allocation2 + $0x50] sm:$0xff]
    %v41 = vld [vmem:[#allocation2 + $0x58] sm:$0xff]
    %v42 = vld [vmem:[#allocation2 + $0x60] sm:$0xff]
    %v43 = vld [vmem:[#allocation2 + $0x68] sm:$0xff]
    %v44 = vld [vmem:[#allocation2 + $0x70] sm:$0xff]
    %v45 = vld [vmem:[#allocation2 + $0x78] sm:$0xff]
    %v46 = vld [vmem:[%s2] sm:$0x1]
    %v48 = vlaneseq
    %v49 = vshrl.u32 %v48, 7
    %v50 = vsub.s32 0, %v49
    %v51 = vrot.slane %v46, %v50
    %53 = vmatprep.subr.mxu0 0.0
    %54 = vmatpush1.msra.mxu0 %v30
    %55 = vmatprep.subr.mxu0 0.0
    %56 = vmatpush1.msra.mxu0 %v31
    %57 = vmatprep.subr.mxu0 0.0
    %58 = vmatpush1.msra.mxu0 %v32
    %59 = vmatprep.subr.mxu0 0.0
    %60 = vmatpush1.msra.mxu0 %v33
    %61 = vmatprep.subr.mxu0 0.0
    %62 = vmatpush1.msra.mxu0 %v34
    %63 = vmatprep.subr.mxu0 0.0
    %64 = vmatpush1.msra.mxu0 %v35
    %65 = vmatprep.subr.mxu0 0.0
    %66 = vmatpush1.msra.mxu0 %v36
    %67 = vmatprep.subr.mxu0 0.0
    %68 = vmatpush1.msra.mxu0 %v37
    %69 = vmatprep.subr.mxu0 0.0
    %70 = vmatpush1.msra.mxu0 %v38
    %71 = vmatprep.subr.mxu0 0.0
    %72 = vmatpush1.msra.mxu0 %v39
    %73 = vmatprep.subr.mxu0 0.0
    %74 = vmatpush1.msra.mxu0 %v40
    %75 = vmatprep.subr.mxu0 0.0
    %76 = vmatpush1.msra.mxu0 %v41
    %77 = vmatprep.subr.mxu0 0.0
    %78 = vmatpush1.msra.mxu0 %v42
    %79 = vmatprep.subr.mxu0 0.0
    %80 = vmatpush1.msra.mxu0 %v43
    %81 = vmatprep.subr.mxu0 0.0
    %82 = vmatpush1.msra.mxu0 %v44
    %83 = vmatprep.subr.mxu0 0.0
    %84 = vmatpush1.msra.mxu0 %v45
    %85 = vmatprep.subr.mxu0 0.0
    %86 = vmatpush1.msra.mxu0 0.0
    %87 = vmatprep.subr.mxu0 0.0
    %88 = vmatpush1.msra.mxu0 0.0
    %89 = vmatprep.subr.mxu0 0.0
    %90 = vmatpush1.msra.mxu0 0.0
    %91 = vmatprep.subr.mxu0 0.0
    %92 = vmatpush1.msra.mxu0 0.0
    %93 = vmatprep.subr.mxu0 0.0
    %94 = vmatpush1.msra.mxu0 0.0
    %95 = vmatprep.subr.mxu0 0.0
    %96 = vmatpush1.msra.mxu0 0.0
    %97 = vmatprep.subr.mxu0 0.0
    %98 = vmatpush1.msra.mxu0 0.0
    %99 = vmatprep.subr.mxu0 0.0
    %100 = vmatpush1.msra.mxu0 0.0
    %101 = vmatprep.subr.mxu0 0.0
    %102 = vmatpush1.msra.mxu0 0.0
    %103 = vmatprep.subr.mxu0 0.0
    %104 = vmatpush1.msra.mxu0 0.0
    %105 = vmatprep.subr.mxu0 0.0
    %106 = vmatpush1.msra.mxu0 0.0
    %107 = vmatprep.subr.mxu0 0.0
    %108 = vmatpush1.msra.mxu0 0.0
    %109 = vmatprep.subr.mxu0 0.0
    %110 = vmatpush1.msra.mxu0 0.0
    %111 = vmatprep.subr.mxu0 0.0
    %112 = vmatpush1.msra.mxu0 0.0
    %113 = vmatprep.subr.mxu0 0.0
    %114 = vmatpush1.msra.mxu0 0.0
    %115 = vmatprep.subr.mxu0 0.0
    %116 = vmatpush1.msra.mxu0 0.0
    %117 = vmatprep.mubr.f32.mxu0 0.0
    %118 = vmatmul.mubr.f32.gmra.mrb[0].mxu0 %v28
    %v119 = vpop.f32.mrb[0].mxu0
    %v120 = vadd.f32 %v51, %v119
    %v121 = vpop.f32.mrb[0].mxu0
    %122 = vmatprep.mubr.f32.mxu0 0.0
    %123 = vmatmul.mubr.f32.gmra.mrb[0].mxu0 %v29
    %v124 = vpop.f32.mrb[0].mxu0
    %v125 = vadd.f32 %v51, %v124
    %v126 = vpop.f32.mrb[0].mxu0
    %127 = vdwg.mxu0
    %128 = vst [vmem:[%s3] sm:$0xff] %v120
    %129 = vst [vmem:[%s3 + $0x8] sm:$0xff] %v125
    // Predicated region
    $region18: #{_linear_forward_padded.1} parent=1 // pred_check
      _
    $region19: #{_linear_forward_padded.1} parent=1 // pred_check_branch
      %131 = sbr.rel (0) target = $region21
    $region20: #{_linear_forward_padded.1} parent=1 // pred_region
      _
    $region21: #{_linear_forward_padded.1} parent=1 // pred_fallthru
      _
    // Predicated region
    $region22: #{_linear_forward_padded.1} parent=1 // pred_check
      _
    $region23: #{_linear_forward_padded.1} parent=1 // pred_check_branch
      %133 = sbr.rel (0) target = $region25
    $region24: #{_linear_forward_padded.1} parent=1 // pred_region
      _
    $region25: #{_linear_forward_padded.1} parent=1 // pred_fallthru
      _
    %134 = vsyncpa [#allocation3], 1

</llo_original>
